<compile_context>
chip_gen: v6e
topology: v6e:2x2x1
jax: 0.10.0
libtpu: 0.0.40
codegen_flags: <defaults>
</compile_context>

<pallas_src>
import jax
import jax.numpy as jnp
from jax.experimental import pallas as pl
from jax.experimental.pallas import tpu as pltpu


def _cdiv(a, b):
    return (a + b - 1) // b


def _round_up(x, m):
    return _cdiv(x, m) * m


def _default_n_split():
    """2 splits only where the 'parallel' axis maps to 2 TensorCores (v7x)."""
    try:
        kind = jax.devices()[0].device_kind.lower()
    except Exception:
        return 1
    return 2 if ("v7" in kind or "7x" in kind) else 1


def _mask_bce_kernel(x_ref, t_ref, tbl_ref, out_ref, acc_ref):
    """x: [TB, Cp] logits (f32/bf16), t: [TB, 1] int32 labels,
    tbl: [Lp, 2*Cp] bf16 (multi-hot targets | mask*eval-weight),
    out: [1, 8, 128] per-split partial sum, acc: [8, Cp] f32 scratch."""
    i = pl.program_id(1)

    @pl.when(i == 0)
    def _init():
        acc_ref[...] = jnp.zeros_like(acc_ref)

    x = x_ref[...].astype(jnp.float32)                        # [TB, Cp]
    tgt = t_ref[...]                                          # [TB, 1] int32
    tb, cp = x.shape
    lp = tbl_ref.shape[0]

    # One-hot of the per-row label; out-of-range (padded) rows -> all zeros.
    labels = jax.lax.broadcasted_iota(jnp.int32, (tb, lp), 1)
    onehot = (tgt == labels).astype(jnp.bfloat16)             # [TB, Lp]

    # Single fused row-gather of both tiny tables via one MXU matmul.
    zm = jnp.dot(onehot, tbl_ref[...],
                 preferred_element_type=jnp.float32)          # [TB, 2*Cp]
    z = zm[:, :cp]                                            # lane-aligned slice
    m = zm[:, cp:]

    # Numerically stable BCE-with-logits (matches torch):
    #   loss = max(x, 0) - x*z + log(1 + exp(-|x|))
    loss = jnp.maximum(x, 0.0) - x * z + jnp.log1p(jnp.exp(-jnp.abs(x)))

    # Per-step partial reduce into a small [8, Cp] accumulator.  The reshape is
    # layout-preserving (last two dims stay (8, Cp) = sublane/lane), so the
    # axis-0 sum is pure VALU vreg adds — no extra vld/vst traffic on scratch.
    acc_ref[...] += jnp.sum((m * loss).reshape(tb // 8, 8, cp), axis=0)

    @pl.when(i == pl.num_programs(1) - 1)
    def _finalize():
        total = jnp.sum(acc_ref[...])
        out_ref[...] = jnp.broadcast_to(total, out_ref.shape)  # lane-dense write


def masked_bce_sum_fused(logits, target, z_tbl, m_tbl, *, n_split=None,
                         max_tile_bytes=8 * 1024 * 1024,
                         vmem_limit_bytes=48 * 1024 * 1024):
    """logits [B, C] (f32 or bf16), target [B] int, z_tbl/m_tbl [L, C] -> scalar f32."""
    B, C = logits.shape
    L = z_tbl.shape[0]
    target = target.reshape(-1)

    if n_split is None:
        n_split = _default_n_split()

    Cp = _round_up(max(C, 128), 128)
    Lp = _round_up(max(L, 8), 8)

    # Keep logits in their native dtype (bf16 halves HBM bytes); upcast in-kernel.
    if logits.dtype not in (jnp.float32, jnp.bfloat16):
        logits = logits.astype(jnp.float32)
    itemsize = logits.dtype.itemsize

    # Batch tile: multiple of 8 sublanes, <= ~max_tile_bytes per logits tile,
    # capped at 1024 rows (past the measured roofline knee), no gross
    # over-padding of tiny batches.
    per_split = _cdiv(B, n_split)
    tb = max(8, (max_tile_bytes // (Cp * itemsize)) // 8 * 8)
    tb = min(tb, 1024)
    tb = min(tb, _round_up(per_split, 8))
    n_inner = _cdiv(per_split, tb)
    Bp = n_split * n_inner * tb

    # Logits: zero-copy fast path when already tile aligned; otherwise ONE pad
    # copy in the native dtype (no f32 upcast round-trip through HBM).
    if Bp == B and Cp == C:
        x = logits
    else:
        x = jnp.zeros((Bp, Cp), logits.dtype).at[:B, :C].set(logits)

    # Per-row labels (tiny).  Padded rows get label = Lp (out of range -> zero
    # one-hot -> zero target & mask -> zero contribution).
    t = jnp.full((Bp, 1), Lp, jnp.int32).at[:B, 0].set(target.astype(jnp.int32))

    # Fused resident table: columns [0, Cp) hold the multi-hot targets,
    # columns [Cp, 2*Cp) hold loss_mask * eval-column-weight.  bf16 is exact
    # for {0,1} and small-integer weights; padded columns carry zero weight.
    tbl = jnp.zeros((Lp, 2 * Cp), jnp.bfloat16)
    tbl = tbl.at[:L, :C].set(z_tbl.astype(jnp.bfloat16))
    tbl = tbl.at[:L, Cp:Cp + C].set(m_tbl.astype(jnp.bfloat16))

    cost = pl.CostEstimate(
        flops=int(2 * Bp * Lp * 2 * Cp + 8 * Bp * Cp),
        transcendentals=int(2 * Bp * Cp),
        bytes_accessed=int(Bp * Cp * itemsize + Bp * 4
                           + Lp * 2 * Cp * 2 + n_split * 8 * 128 * 4),
    )

    partials = pl.pallas_call(
        _mask_bce_kernel,
        out_shape=jax.ShapeDtypeStruct((n_split, 8, 128), jnp.float32),
        grid_spec=pltpu.PrefetchScalarGridSpec(
            num_scalar_prefetch=0,
            grid=(n_split, n_inner),
            in_specs=[
                # logits: the only real HBM stream, pipelined per batch tile.
                pl.BlockSpec((tb, Cp), lambda c, i: (c * n_inner + i, 0)),
                # per-row labels (tiny).
                pl.BlockSpec((tb, 1), lambda c, i: (c * n_inner + i, 0)),
                # fused table: constant block index => copied once, resident.
                pl.BlockSpec((Lp, 2 * Cp), lambda c, i: (0, 0)),
            ],
            # one lane-dense partial-sum block per parallel split (per core).
            out_specs=pl.BlockSpec((1, 8, 128), lambda c, i: (c, 0, 0)),
            scratch_shapes=[pltpu.VMEM((8, Cp), jnp.float32)],
        ),
        compiler_params=pltpu.CompilerParams(
            # leading axis parallel (2 TCs on v7x), reduction axis arbitrary/last.
            dimension_semantics=("parallel", "arbitrary"),
            # 2 x ~8 MiB logits buffers + bf16 table + [8, Cp] acc << 48 MiB,
            # which stays inside v7x's 64 MiB physical VMEM and is plenty of
            # headroom above the usage on 128 MiB chips.
            vmem_limit_bytes=vmem_limit_bytes,
        ),
        cost_estimate=cost,
    )(x, t, tbl)

    # Tiny cross-split combine outside the kernel.
    return jnp.sum(partials[:, 0, 0])


class SyntheticHierEncoder:
    """Deterministic stand-in for the hierarchy encoder used by MaskBCE."""

    def __init__(self, num_labels, num_nodes, idx_to_eval):
        self.num_labels = num_labels
        self.num_nodes = num_nodes
        self.idx_to_eval = idx_to_eval  # [E] int32 column indices
        l = jnp.arange(num_labels)[:, None]
        c = jnp.arange(num_nodes)[None, :]
        # Multi-hot "ancestor" transform matrix [num_labels, num_nodes] in {0,1}.
        self._transform = ((c % num_labels == l) | (c < num_labels // 2)).astype(jnp.float32)
        # Per-label loss mask [num_labels, num_nodes] in {0,1}.
        self._loss_mask = (((l + c) % 3) != 0).astype(jnp.float32)

    def get_lossMask(self):
        return self._loss_mask

    def transform(self, target):
        # target: [B] int -> [B, num_nodes] float32 multi-hot
        return self._transform[target]


def mask_bce_forward(encoder, output, target):
    """JAX/Pallas equivalent of MaskBCE.forward(output, target)."""
    C = output.shape[1]
    L = encoder.num_labels
    # Per-label multi-hot target table (= transform applied to each label id).
    z_tbl = encoder.transform(jnp.arange(L, dtype=jnp.int32))          # [L, C]
    # Fold idx_to_eval into the mask as a per-column eval weight (handles
    # duplicates with correct multiplicity); un-evaluated columns get weight 0.
    # TODO(synk): if E << C, compacting eval columns once (wrapper-side gather)
    # would also cut the per-element exp/log work on EUP-bound v7x.
    eval_w = jnp.zeros((C,), jnp.float32).at[encoder.idx_to_eval].add(1.0)
    m_tbl = encoder.get_lossMask().astype(jnp.float32) * eval_w[None, :]  # [L, C]
    return masked_bce_sum_fused(output, target, z_tbl, m_tbl)


def _reference(encoder, output, target):
    """Pure-JAX reference of the full torch forward."""
    idx = encoder.idx_to_eval
    xf = output.astype(jnp.float32)
    x = jnp.take(xf, idx, axis=1)
    z = jnp.take(encoder.transform(target), idx, axis=1)
    m = jnp.take(encoder.get_lossMask()[target], idx, axis=1)
    return jnp.sum(m * (jnp.maximum(x, 0.0) - x * z + jnp.log1p(jnp.exp(-jnp.abs(x)))))


if __name__ == "__main__":
    key = jax.random.PRNGKey(0)
    k1, k2, k3, k4 = jax.random.split(key, 4)

    # --- Test 1: small, unaligned shapes (exercises the padding path) -------
    B, num_labels, C = 8, 6, 32
    idx_to_eval = jnp.array([i for i in range(C) if i % 4 != 3], dtype=jnp.int32)
    enc1 = SyntheticHierEncoder(num_labels, C, idx_to_eval)
    out1 = jax.random.normal(k1, (B, C), dtype=jnp.float32)
    tgt1 = jax.random.randint(k2, (B,), 0, num_labels, dtype=jnp.int32)

    loss1 = jax.block_until_ready(mask_bce_forward(enc1, out1, tgt1))
    ref1 = _reference(enc1, out1, tgt1)
    assert jnp.allclose(loss1, ref1, rtol=1e-4, atol=1e-4), (loss1, ref1)

    # --- Test 2: tile-aligned bf16 logits (exercises the zero-copy path) ----
    B2, num_labels2, C2 = 16, 10, 128
    idx2 = jnp.array([i for i in range(C2) if i % 2 == 0], dtype=jnp.int32)
    enc2 = SyntheticHierEncoder(num_labels2, C2, idx2)
    out2 = jax.random.normal(k3, (B2, C2), dtype=jnp.float32).astype(jnp.bfloat16)
    tgt2 = jax.random.randint(k4, (B2,), 0, num_labels2, dtype=jnp.int32)

    loss2 = jax.block_until_ready(mask_bce_forward(enc2, out2, tgt2))
    ref2 = _reference(enc2, out2, tgt2)
    assert jnp.allclose(loss2, ref2, rtol=1e-4, atol=1e-4), (loss2, ref2)

    print("KERNEL_OK")
</pallas_src>

<mosaic_0001>
module attributes {stable_mosaic.version = 11 : i64} {
  func.func @_mask_bce_kernel(%arg0: i32, %arg1: i32, %arg2: memref<8x128xf32, #tpu.memory_space<vmem>>, %arg3: memref<8x1xi32, #tpu.memory_space<vmem>>, %arg4: memref<8x256xbf16, #tpu.memory_space<vmem>>, %arg5: memref<1x8x128xf32, #tpu.memory_space<vmem>>, %arg6: memref<8x128xf32, #tpu.memory_space<vmem>>) attributes {dimension_semantics = [#tpu.dimension_semantics<parallel>, #tpu.dimension_semantics<arbitrary>], iteration_bounds = array<i64: 1, 1>, scalar_prefetch = 0 : i64, scratch_operands = 1 : i64, tpu.core_type = #tpu.core_type<tc>, window_params = [{transform_indices = @transform_0, window_bounds = array<i64: 8, 128>}, {transform_indices = @transform_1, window_bounds = array<i64: 8, 1>}, {pipeline_mode = #tpu.pipeline_mode<synchronous>, transform_indices = @transform_2, window_bounds = array<i64: 8, 256>}, {transform_indices = @transform_3, window_bounds = array<i64: 1, 8, 128>}]} {
    %c0_i32 = arith.constant 0 : i32
    %0 = arith.cmpi eq, %arg1, %c0_i32 : i32
    %1 = arith.extui %0 : i1 to i32
    %c0_i32_0 = arith.constant 0 : i32
    %2 = arith.cmpi ne, %1, %c0_i32_0 : i32
    scf.if %2 {
      %cst_15 = arith.constant 0.000000e+00 : f32
      %34 = vector.broadcast %cst_15 : f32 to vector<8x128xf32>
      %c0_16 = arith.constant 0 : index
      %c0_17 = arith.constant 0 : index
      %35 = vector.load %arg6[%c0_16, %c0_17] : memref<8x128xf32, #tpu.memory_space<vmem>>, vector<8x128xf32>
      tpu.vector_store %arg6[%c0_16, %c0_17], %34 {strides = array<i32>} : memref<8x128xf32, #tpu.memory_space<vmem>>, vector<8x128xf32>,
    } else {
    }
    %c0 = arith.constant 0 : index
    %c0_1 = arith.constant 0 : index
    %3 = vector.load %arg2[%c0, %c0_1] : memref<8x128xf32, #tpu.memory_space<vmem>>, vector<8x128xf32>
    %c0_2 = arith.constant 0 : index
    %c0_3 = arith.constant 0 : index
    %4 = vector.load %arg3[%c0_2, %c0_3] : memref<8x1xi32, #tpu.memory_space<vmem>>, vector<8x1xi32>
    %5 = tpu.iota {dimensions = array<i32: 1>} : vector<8x8xi32>
    %6 = vector.broadcast %4 : vector<8x1xi32> to vector<8x8xi32>
    %7 = arith.cmpi eq, %6, %5 : vector<8x8xi32>
    %8 = arith.extui %7 : vector<8x8xi1> to vector<8x8xi32>
    %9 = arith.sitofp %8 : vector<8x8xi32> to vector<8x8xf32>
    %10 = arith.truncf %9 : vector<8x8xf32> to vector<8x8xbf16>
    %c0_4 = arith.constant 0 : index
    %c0_5 = arith.constant 0 : index
    %11 = vector.load %arg4[%c0_4, %c0_5] : memref<8x256xbf16, #tpu.memory_space<vmem>>, vector<8x256xbf16>
    %cst = arith.constant dense<0.000000e+00> : vector<8x256xf32>
    %12 = tpu.matmul %10, %11, %cst {dimension_numbers = #tpu.dot_dimension_numbers<[1], [0], [0], [1], [0, 0, 1, 1], [], []>} : vector<8x8xbf16>, vector<8x256xbf16>, vector<8x256xf32> -> vector<8x256xf32>
    %13 = vector.extract_strided_slice %12 {offsets = [0, 0], sizes = [8, 128], strides = [1, 1]} : vector<8x256xf32> to vector<8x128xf32>
    %14 = vector.extract_strided_slice %12 {offsets = [0, 128], sizes = [8, 128], strides = [1, 1]} : vector<8x256xf32> to vector<8x128xf32>
    %cst_6 = arith.constant 0.000000e+00 : f32
    %15 = vector.broadcast %cst_6 : f32 to vector<8x128xf32>
    %16 = arith.maximumf %3, %15 : vector<8x128xf32>
    %17 = arith.mulf %3, %13 : vector<8x128xf32>
    %18 = arith.subf %16, %17 : vector<8x128xf32>
    %19 = math.absf %3 : vector<8x128xf32>
    %cst_7 = arith.constant 0.000000e+00 : f32
    %20 = vector.broadcast %cst_7 : f32 to vector<8x128xf32>
    %21 = arith.subf %20, %19 : vector<8x128xf32>
    %22 = math.exp %21 : vector<8x128xf32>
    %23 = math.log1p %22 : vector<8x128xf32>
    %24 = arith.addf %18, %23 : vector<8x128xf32>
    %c0_8 = arith.constant 0 : index
    %c0_9 = arith.constant 0 : index
    %25 = vector.load %arg6[%c0_8, %c0_9] : memref<8x128xf32, #tpu.memory_space<vmem>>, vector<8x128xf32>
    %26 = arith.mulf %14, %24 : vector<8x128xf32>
    %27 = vector.shape_cast %26 : vector<8x128xf32> to vector<1x8x128xf32>
    %cst_10 = arith.constant dense<0.000000e+00> : vector<8x128xf32>
    %28 = vector.multi_reduction <add>, %27, %cst_10 [0] : vector<1x8x128xf32> to vector<8x128xf32>
    %29 = arith.addf %25, %28 : vector<8x128xf32>
    %c0_11 = arith.constant 0 : index
    %c0_12 = arith.constant 0 : index
    %30 = vector.load %arg6[%c0_11, %c0_12] : memref<8x128xf32, #tpu.memory_space<vmem>>, vector<8x128xf32>
    tpu.vector_store %arg6[%c0_11, %c0_12], %29 {strides = array<i32>} : memref<8x128xf32, #tpu.memory_space<vmem>>, vector<8x128xf32>,
    %c0_i32_13 = arith.constant 0 : i32
    %31 = arith.cmpi eq, %arg1, %c0_i32_13 : i32
    %32 = arith.extui %31 : i1 to i32
    %c0_i32_14 = arith.constant 0 : i32
    %33 = arith.cmpi ne, %32, %c0_i32_14 : i32
    scf.if %33 {
      %c0_15 = arith.constant 0 : index
      %c0_16 = arith.constant 0 : index
      %34 = vector.load %arg6[%c0_15, %c0_16] : memref<8x128xf32, #tpu.memory_space<vmem>>, vector<8x128xf32>
      %35 = vector.shape_cast %34 : vector<8x128xf32> to vector<1x8x128xf32>
      %cst_17 = arith.constant dense<0.000000e+00> : vector<1xf32>
      %36 = vector.multi_reduction <add>, %35, %cst_17 [1, 2] : vector<1x8x128xf32> to vector<1xf32>
      %37 = vector.shape_cast %36 : vector<1xf32> to vector<1x1x1xf32>
      %38 = vector.extract %37[0, 0, 0] : f32 from vector<1x1x1xf32>
      %39 = vector.broadcast %38 : f32 to vector<1x8x128xf32>
      %c0_18 = arith.constant 0 : index
      %c0_19 = arith.constant 0 : index
      %c0_20 = arith.constant 0 : index
      %40 = vector.load %arg5[%c0_18, %c0_19, %c0_20] : memref<1x8x128xf32, #tpu.memory_space<vmem>>, vector<1x8x128xf32>
      tpu.vector_store %arg5[%c0_18, %c0_19, %c0_20], %39 {strides = array<i32>} : memref<1x8x128xf32, #tpu.memory_space<vmem>>, vector<1x8x128xf32>,
    } else {
    }
    return
  }
  func.func @transform_0(%arg0: i32, %arg1: i32) -> (i32, i32) {
    %c1_i32 = arith.constant 1 : i32
    %0 = arith.muli %arg0, %c1_i32 : i32
    %1 = arith.addi %0, %arg1 : i32
    %c0_i32 = arith.constant 0 : i32
    %c0_i32_0 = arith.constant 0 : i32
    return %1, %c0_i32 : i32, i32
  }
  func.func @transform_1(%arg0: i32, %arg1: i32) -> (i32, i32) {
    %c1_i32 = arith.constant 1 : i32
    %0 = arith.muli %arg0, %c1_i32 : i32
    %1 = arith.addi %0, %arg1 : i32
    %c0_i32 = arith.constant 0 : i32
    %c0_i32_0 = arith.constant 0 : i32
    return %1, %c0_i32 : i32, i32
  }
  func.func @transform_2(%arg0: i32, %arg1: i32) -> (i32, i32) {
    %c0_i32 = arith.constant 0 : i32
    %c0_i32_0 = arith.constant 0 : i32
    %c0_i32_1 = arith.constant 0 : i32
    return %c0_i32, %c0_i32_0 : i32, i32
  }
  func.func @transform_3(%arg0: i32, %arg1: i32) -> (i32, i32, i32) {
    %c0_i32 = arith.constant 0 : i32
    %c0_i32_0 = arith.constant 0 : i32
    %c0_i32_1 = arith.constant 0 : i32
    return %arg0, %c0_i32, %c0_i32_0 : i32, i32, i32
  }
}

</mosaic_0001>

<llo_original>
// kernel: tpu_custom_call.1
$region0: #{tpu_custom_call.1}
  #allocation0 [shape = 'u32[]', space=smem, size = 0x4, offset = 0x4, fixed_abs, tag = 'smem constant byte address 0x4 - core index']
  #allocation1 [shape = 'u32[144,128]{1,0:T(1,128)}', space=vmem, size = 0x12000, scoped, tag = 'internal scratch']
  #allocation2 [shape = 'f32[8,128]{1,0:T(8,128)}', space=vmem, size = 0x1000, scoped, tag = 'scratch operand']
  %s0 = inlined_call_operand.vmem [shape: f32[8,128], index: 0, kind: input, shape index: {}]
  %s1 = inlined_call_operand.vmem [shape: s32[8,1], index: 1, kind: input, shape index: {}]
  %s2 = inlined_call_operand.hbm [shape: bf16[8,256], index: 2, kind: input, shape index: {}]
  %s3 = inlined_call_operand.hbm [shape: f32[1,8,128], index: 3, kind: output, shape index: {}]
  %s4 = sld [smem:[#allocation0]]
  $region34: #{tpu_custom_call.1} parent=0
    _
  %s6 = ssub.s32 1, %s4
  %s7 = scalar_select 0, %s6, %s4
  $region1: #{tpu_custom_call.1} parent=0
    #allocation3 [shape = 'u8[4096]{0}', space=vmem, size = 0x1000, scoped, tag = 'input window, operand 2, single buffered']
    #allocation4 [shape = 's32[1]{0}', space=sflag, size = 0x4, scoped, tag = 'scoped memory for tpu_custom_call.1']
    #allocation5 [shape = 's32[1]{0}', space=sflag, size = 0x4, scoped, tag = 'scoped memory for tpu_custom_call.1']
    #allocation6 [shape = 'u8[4096]{0}', space=vmem, size = 0x1000, scoped, tag = 'output window, operand 0, single buffered']
    %8 = vsyncpa [#allocation4], 0
    %9 = vsyncpa [#allocation5], 0
    // Predicated region
    $region2: #{tpu_custom_call.1} parent=1 // pred_check
      _
    $region3: #{tpu_custom_call.1} parent=1 // pred_check_branch
      %11 = sbr.rel (0) target = $region5
    $region4: #{tpu_custom_call.1} parent=1 // pred_region
      %s12 = sadd.s32 0, 0
      %p13 = scmp.lt.s32.totalorder %s12, 0
      %s14 = scalar_select %p13, %s12, 0
      %s15 = smul.addr %s14, 8
      %s16 = scalar_lea.vmem %s0, %s15
      %s17 = sadd.s32 0, 0
    $region5: #{tpu_custom_call.1} parent=1 // pred_fallthru
      _
    // Predicated region
    $region6: #{tpu_custom_call.1} parent=1 // pred_check
      _
    $region7: #{tpu_custom_call.1} parent=1 // pred_check_branch
      %19 = sbr.rel (0) target = $region9
    $region8: #{tpu_custom_call.1} parent=1 // pred_region
      %s20 = sadd.s32 0, 0
      %p21 = scmp.lt.s32.totalorder %s20, 0
      %s22 = scalar_select %p21, %s20, 0
      %s23 = smul.addr %s22, 8
      %s24 = scalar_lea.vmem %s1, %s23
      %s25 = sadd.s32 0, 0
    $region9: #{tpu_custom_call.1} parent=1 // pred_fallthru
      _
    // Predicated region
    $region10: #{tpu_custom_call.1} parent=1 // pred_check
      _
    $region11: #{tpu_custom_call.1} parent=1 // pred_check_branch
      %27 = sbr.rel (0) target = $region13
    $region12: #{tpu_custom_call.1} parent=1 // pred_region
      %s29 = ssub.s32 128, 128
      %30 = vsyncadd [#allocation4], %s29
      %s32 = sshll.u32 [#allocation3], 4
      %s33 = int_to_ptr.vmem [resolvable:$true] %s32
      %35 = dma.hbm_to_vmem [thread:$0]  %s2, 128, %s33, [#allocation4]
    $region13: #{tpu_custom_call.1} parent=1 // pred_fallthru
      _
    // Predicated region
    $region14: #{tpu_custom_call.1} parent=1 // pred_check
      _
    $region15: #{tpu_custom_call.1} parent=1 // pred_check_branch
      %37 = sbr.rel (0) target = $region17
    $region16: #{tpu_custom_call.1} parent=1 // pred_region
      %38 = dma.done [#allocation4], 128
    $region17: #{tpu_custom_call.1} parent=1 // pred_fallthru
      _
    %s39 = sadd.s32 0, 0
    %p40 = scmp.lt.s32.totalorder %s39, 0
    %s41 = scalar_select %p40, %s39, 0
    %s42 = smul.addr %s41, 8
    %s43 = scalar_lea.vmem %s0, %s42
    %s44 = sadd.s32 0, 0
    %p45 = scmp.lt.s32.totalorder %s44, 0
    %s46 = scalar_select %p45, %s44, 0
    %s47 = smul.addr %s46, 8
    %s48 = scalar_lea.vmem %s1, %s47
    %s49 = sadd.s32 0, 0
    %p50 = scmp.lt.s32.totalorder %s49, 0
    %s51 = scalar_select %p50, %s49, 0
    %s52 = smul.addr %s51, 8
    %s53 = scalar_lea.vmem %s0, %s52
    %s54 = sadd.s32 0, 0
    %s55 = sadd.s32 0, 0
    %p56 = scmp.lt.s32.totalorder %s55, 0
    %s57 = scalar_select %p56, %s55, 0
    %s58 = smul.addr %s57, 8
    %s59 = scalar_lea.vmem %s1, %s58
    %s60 = sadd.s32 0, 0
    %p62 = scmp.eq.s32.totalorder 0, 0
    // Predicated region
    $region18: #{tpu_custom_call.1} parent=1 // pred_check
      %p63 = pneg %p62
    $region19: #{tpu_custom_call.1} parent=1 // pred_check_branch
      %65 = sbr.rel (%p63) target = $region21
    $region20: #{tpu_custom_call.1} parent=1 // pred_region
      %66 = vst [vmem:[#allocation2] sm:$0xff] 0.0
    $region21: #{tpu_custom_call.1} parent=1 // pred_fallthru
      _
    %v67 = vld [vmem:[%s53] sm:$0xff]
    %v68 = vld [vmem:[%s59] sm:$0xff]
    %v69 = vlaneseq
    %v70 = vand.u32 %v69, 127
    %71 = vset.pattern.permute.xlu0 0
    %72 = vperm.xlu0 %71, %v68
    %v73 = vpop.permute.xlu0 %72
    %vm74 = vcmp.eq.s32.totalorder %v73, %v70
    %v75 = vsel %vm74, 1, 0
    %v76 = vcvt.s32.f32 %v75
    %v77 = vpack.c.bf16 %v76, %v76
    %v78 = vld [vmem:[#allocation3] sm:$0xff]
    %v80 = vunpack.c.l.b16 %v78
    %v81 = vunpack.c.h.b16 %v78
    %v82 = vpack.c.b16 %v80, %v80
    %v83 = vpack.c.b16 %v81, %v81
    %vm84 = vcmask 64512
    %v86 = vsel %vm84, %v77, 0
    %vm88 = vcmask 1043456
    %v90 = vsel %vm88, %v82, 0
    %v93 = vsel %vm88, %v83, 0
    %95 = vmatprep.subr.bf16.mxu0 0
    %96 = vmatpush1.bf16.msra.mxu0 0
    %97 = vmatprep.subr.bf16.mxu0 0
    %98 = vmatpush1.bf16.msra.mxu0 0
    %99 = vmatprep.subr.bf16.mxu0 0
    %100 = vmatpush1.bf16.msra.mxu0 0
    %101 = vmatprep.subr.bf16.mxu0 0
    %102 = vmatpush1.bf16.msra.mxu0 0
    %103 = vmatprep.subr.bf16.mxu0 0
    %104 = vmatpush1.bf16.msra.mxu0 0
    %105 = vmatprep.subr.bf16.mxu0 0
    %106 = vmatpush1.bf16.msra.mxu0 0
    %107 = vmatprep.subr.bf16.mxu0 0
    %108 = vmatpush1.bf16.msra.mxu0 0
    %109 = vmatprep.subr.bf16.mxu0 %v93
    %110 = vmatpush1.bf16.msra.mxu0 %v90
    %111 = vmatprep.subr.bf16.mxu0 0
    %112 = vmatpush2.bf16.msra.mxu0 0
    %113 = vmatprep.subr.bf16.mxu0 0
    %114 = vmatpush2.bf16.msra.mxu0 0
    %115 = vmatprep.subr.bf16.mxu0 0
    %116 = vmatpush2.bf16.msra.mxu0 0
    %117 = vmatprep.subr.bf16.mxu0 0
    %118 = vmatpush2.bf16.msra.mxu0 0
    %119 = vmatprep.subr.bf16.mxu0 0
    %120 = vmatpush2.bf16.msra.mxu0 0
    %121 = vmatprep.subr.bf16.mxu0 0
    %122 = vmatpush2.bf16.msra.mxu0 0
    %123 = vmatprep.subr.bf16.mxu0 0
    %124 = vmatpush2.bf16.msra.mxu0 0
    %125 = vmatprep.subr.bf16.mxu0 0
    %126 = vmatpush2.bf16.msra.mxu0 0
    %127 = vmatprep.mubr.bf16.mxu0 0
    %128 = vmatmul.mubr.bf16.gmra.mxu0 %v86
    %v129 = vpop.f32.mrf.mxu0
    %v130 = vadd.f32 0.0, %v129
    %v131 = vpop.f32.mrf.mxu0
    %v132 = vadd.f32 0.0, %v131
    %v133 = vpop.f32.mrf.mxu0
    %v134 = vpop.f32.mrf.mxu0
    %135 = vdwg.mxu0
    %v136 = vmax.f32 %v67, 0.0
    %v137 = vmul.f32 %v67, %v130
    %v138 = vsub.f32 %v136, %v137
    %v139 = vand.u32 2147483647, %v67
    %v140 = vsub.f32 0.0, %v139
    %v141 = vmul.f32 %v140, 1.442695
    %v142 = vpow.pop %v141
    %v143 = vadd.f32 %v142, 1.0
    %v144 = vlog2.pop %v143
    %v145 = vmul.f32 %v144, 0.6931472
    %v146 = vmul.f32 -0.5, %v142
    %v147 = vadd.f32 %v146, 1.0
    %v148 = vmul.f32 %v147, %v142
    %v149 = vand.u32 2147483647, %v142
    %vm150 = vcmp.lt.f32.partialorder %v149, 0.0004427343
    %v151 = vsel %vm150, %v148, %v145
    %v152 = vadd.f32 %v138, %v151
    %v153 = vld [vmem:[#allocation2] sm:$0xff]
    %v154 = vmul.f32 %v132, %v152
    %v155 = vadd.f32 %v154, 0.0
    %v156 = vadd.f32 %v153, %v155
    %157 = vst [vmem:[#allocation2] sm:$0xff] %v156
    // Predicated region
    $region22: #{tpu_custom_call.1} parent=1 // pred_check
      %p158 = pneg %p62
    $region23: #{tpu_custom_call.1} parent=1 // pred_check_branch
      %160 = sbr.rel (%p158) target = $region25
    $region24: #{tpu_custom_call.1} parent=1 // pred_region
      %v161 = vld [vmem:[#allocation2] sm:$0xff]
      %162 = vadd.xlane.f32.xlu0 %v161
      %v163 = vpop.xlane.xlu0 %162
      %v164 = vrot.slane %v163, 4
      %v165 = vadd.f32 %v163, %v164
      %v166 = vrot.slane %v165, 2
      %v167 = vadd.f32 %v165, %v166
      %v168 = vrot.slane %v167, 1
      %v169 = vadd.f32 %v167, %v168
      %s170 = vtos %v169
      %v171 = vstv %s170
      %172 = vst [vmem:[#allocation6] sm:$0xff] %v171
    $region25: #{tpu_custom_call.1} parent=1 // pred_fallthru
      _
    // Predicated region
    $region26: #{tpu_custom_call.1} parent=1 // pred_check
      _
    $region27: #{tpu_custom_call.1} parent=1 // pred_check_branch
      %174 = sbr.rel (0) target = $region29
    $region28: #{tpu_custom_call.1} parent=1 // pred_region
      %s176 = ssub.s32 128, 128
      %177 = vsyncadd [#allocation5], %s176
      %s179 = sshll.u32 [#allocation6], 4
      %s180 = int_to_ptr.vmem [resolvable:$true] %s179
      %182 = dma.vmem_to_hbm [thread:$0]  %s180, 128, %s3, [#allocation5]
    $region29: #{tpu_custom_call.1} parent=1 // pred_fallthru
      _
    // Predicated region
    $region30: #{tpu_custom_call.1} parent=1 // pred_check
      _
    $region31: #{tpu_custom_call.1} parent=1 // pred_check_branch
      %184 = sbr.rel (0) target = $region33
    $region32: #{tpu_custom_call.1} parent=1 // pred_region
      %185 = dma.done [#allocation5], 128
    $region33: #{tpu_custom_call.1} parent=1 // pred_fallthru
      _
    %186 = vsyncpa [#allocation4], 1
    %187 = vsyncpa [#allocation5], 1

</llo_original>
